<compile_context>
chip_gen: v6e
topology: v6e:2x2x1
jax: 0.10.0
libtpu: 0.0.40
codegen_flags: <defaults>
</compile_context>

<pallas_src>
import functools
import math

import jax
import jax.numpy as jnp
from jax import lax
from jax.experimental import pallas as pl
from jax.experimental.pallas import tpu as pltpu

_ACC_ROWS = 8       # sublane height of the accumulator output blocks
_TEMPS_FACTOR = 6   # estimated live full-block f32 elementwise temporaries


def _fold_rows(sq, rows):
    """Reduce (R, W) -> (rows, W) with cheap cross-vreg adds (R % rows == 0)."""
    r, w = sq.shape
    if r == rows:
        return sq
    return jnp.sum(sq.reshape(r // rows, rows, w), axis=0)


def _build_row_interior_mask(vmask_ref, image_size):
    """0/1 mask that zeroes the last row of every plane (built once, step 0)."""
    r, w = vmask_ref.shape
    row = lax.broadcasted_iota(jnp.int32, (r, w), 0)
    if image_size & (image_size - 1) == 0:            # power-of-two fast path
        local = jnp.bitwise_and(row, image_size - 1)
    else:
        local = lax.rem(row, image_size)
    vmask_ref[...] = jnp.where(local != image_size - 1, 1.0, 0.0).astype(jnp.float32)


def _accumulate_tv(xb, vmask_ref, h_ref, w_ref):
    """xb: (R, W) f32 slab holding whole image planes (R % image_size == 0)."""
    r, w = xb.shape

    # ---- vertical (h_tv): x[row+1] - x[row] within each plane ----
    xv = pltpu.roll(xb, shift=r - 1, axis=0)          # xv[k] = xb[(k+1) % r]
    dv = (xv - xb) * vmask_ref[...]                   # precomputed interior mask
    h_ref[...] += _fold_rows(dv * dv, h_ref.shape[0])

    # ---- horizontal (w_tv): x[col+1] - x[col] within each row ----
    if w % 128 == 0:
        xh = pltpu.roll(xb, shift=w - 1, axis=1)      # aligned lane roll
        dw = xh - xb
        # Wrap garbage lives only in column w-1; it is excluded in the
        # wrapper-side reduction, so no per-element mask is needed here.
        w_ref[...] += _fold_rows(dw * dw, w_ref.shape[0])
    elif w > 1:
        # Small-width fallback (only for W < 128; wide W is padded to 128k).
        dw = xb[:, 1:] - xb[:, : w - 1]
        w_ref[:, : w - 1] += _fold_rows(dw * dw, w_ref.shape[0])


def _tv_kernel(x_ref, h_ref, w_ref, vmask_ref, *, image_size):
    @pl.when(pl.program_id(1) == 0)
    def _():
        h_ref[...] = jnp.zeros_like(h_ref)
        w_ref[...] = jnp.zeros_like(w_ref)
        _build_row_interior_mask(vmask_ref, image_size)

    _accumulate_tv(x_ref[...].astype(jnp.float32), vmask_ref, h_ref, w_ref)


def _tv_kernel_masked(x_ref, m_ref, h_ref, w_ref, vmask_ref, seam_ref, *,
                      image_size):
    @pl.when(pl.program_id(1) == 0)
    def _():
        h_ref[...] = jnp.zeros_like(h_ref)
        w_ref[...] = jnp.zeros_like(w_ref)
        _build_row_interior_mask(vmask_ref, image_size)
        # Replicate the single (H, W) seam mask across the P planes of a block.
        planes = seam_ref.shape[0] // image_size
        for p in range(planes):
            seam_ref[p * image_size:(p + 1) * image_size, :] = m_ref[...]

    xb = x_ref[...].astype(jnp.float32) * seam_ref[...]
    _accumulate_tv(xb, vmask_ref, h_ref, w_ref)


def make_tv_mask(image_size, patch_size, seam_wide):
    """Single-channel copy of the nn.Parameter seam mask (all 3 channels are
    identical in the PyTorch module).  NB: `index = i * slide_num` reproduces
    the original PyTorch indexing bug-for-bug (inherited behavior)."""
    mask = jnp.zeros((image_size, image_size), dtype=jnp.float32)
    slide_num = image_size // patch_size
    for i in range(1, slide_num - 1):
        index = i * slide_num
        mask = mask.at[index - seam_wide:index + seam_wide, :].set(1.0)
        mask = mask.at[:, index - seam_wide:index + seam_wide].set(1.0)
    return mask


def _vmem_capacity_bytes():
    try:
        return int(pltpu.get_tpu_info().vmem_capacity_bytes)
    except Exception:
        return 64 << 20   # conservative (v7x per-TC physical VMEM)


def _choose_planes_per_block(n_planes, plane_rows, width_pad, x_itemsize, budget):
    """Largest P (multiple of the 8-row alignment, dividing n_planes) whose
    input block fits the budget, preferring P values giving an even block
    count so the leading 'parallel' grid axis can be 2 (v7x megacore)."""
    p_align = 8 // math.gcd(plane_rows, 8)
    per_plane = plane_rows * width_pad * x_itemsize
    cands = [p for p in range(p_align, n_planes + 1, p_align) if n_planes % p == 0]
    fits = [p for p in cands if p * per_plane <= budget] or [p_align]
    even = [p for p in fits if (n_planes // p) % 2 == 0]
    return max(even) if even else max(fits)


def tv_loss(x, *, tv_loss_weight=1.0, image_size=None, with_mask=False,
            patch_size=128, seam_wide=4, input_vmem_budget=None):
    """Forward pass of TVLoss.  x: (B, C, H, W) with H == W == imageSize."""
    B, C, H, W = x.shape
    if image_size is None:
        image_size = H
    assert H == image_size and W == image_size, "TVLoss expects H == W == imageSize"

    phys_vmem = _vmem_capacity_bytes()
    if input_vmem_budget is None:
        # Bigger blocks on 128 MiB parts (v5e/v6e), smaller on 64 MiB (v7x).
        input_vmem_budget = (6 << 20) if phys_vmem >= (96 << 20) else (3 << 20)

    n_planes = B * C
    xf = x.reshape(n_planes * H, W)

    # Lane padding: keep the cheap lane-roll path for wide, misaligned W.
    W_pad = W
    if W > 128 and W % 128 != 0:
        W_pad = ((W + 127) // 128) * 128
        xf = jnp.pad(xf, ((0, 0), (0, W_pad - W)))

    # Plane padding: (8, .)-aligned blocks, and an even total plane count so
    # the 'parallel' chunk axis can be 2.  Zero planes contribute nothing.
    p_align = 8 // math.gcd(H, 8)
    total = n_planes
    pad_planes = (-total) % p_align
    total += pad_planes
    if total > 1 and total % 2 == 1:      # only possible when p_align == 1
        pad_planes += 1
        total += 1
    if pad_planes:
        xf = jnp.concatenate(
            [xf, jnp.zeros((pad_planes * H, W_pad), dtype=xf.dtype)], axis=0)
    n_planes = total

    P = _choose_planes_per_block(n_planes, H, W_pad, x.dtype.itemsize,
                                 input_vmem_budget)
    num_blocks = n_planes // P
    num_chunks = 2 if (num_blocks % 2 == 0 and num_blocks >= 2) else 1
    steps = num_blocks // num_chunks
    block_rows = P * H

    x_spec = pl.BlockSpec((block_rows, W_pad), lambda c, i: (c * steps + i, 0))
    out_specs = (pl.BlockSpec((_ACC_ROWS, W_pad), lambda c, i: (c, 0)),
                 pl.BlockSpec((_ACC_ROWS, W_pad), lambda c, i: (c, 0)))
    out_shapes = (jax.ShapeDtypeStruct((num_chunks * _ACC_ROWS, W_pad), jnp.float32),
                  jax.ShapeDtypeStruct((num_chunks * _ACC_ROWS, W_pad), jnp.float32))

    scratch = [pltpu.VMEM((block_rows, W_pad), jnp.float32)]   # row-interior mask
    block_in_bytes = block_rows * W_pad * x.dtype.itemsize
    block_f32_bytes = block_rows * W_pad * 4

    if with_mask:
        seam = make_tv_mask(image_size, patch_size, seam_wide)
        if W_pad > W:
            seam = jnp.pad(seam, ((0, 0), (0, W_pad - W)))
        kernel = functools.partial(_tv_kernel_masked, image_size=image_size)
        in_specs = [x_spec,
                    pl.BlockSpec((H, W_pad), lambda c, i: (0, 0))]  # DMA'd once
        args = (xf, seam)
        scratch.append(pltpu.VMEM((block_rows, W_pad), jnp.float32))  # seam tile
        mask_bytes = H * W_pad * 4
    else:
        kernel = functools.partial(_tv_kernel, image_size=image_size)
        in_specs = [x_spec]
        args = (xf,)
        mask_bytes = 0

    out_bytes = 2 * num_chunks * _ACC_ROWS * W_pad * 4
    vmem_needed = (2 * block_in_bytes                        # double-buffered input
                   + len(scratch) * block_f32_bytes          # VMEM scratch masks
                   + 2 * mask_bytes                          # resident seam input
                   + _TEMPS_FACTOR * block_f32_bytes         # elementwise temps
                   + 2 * out_bytes + (2 << 20))              # outputs + headroom
    vmem_cap = max(phys_vmem - (8 << 20), 16 << 20)          # leave compiler headroom
    vmem_limit = int(min(max(vmem_needed, 32 << 20), vmem_cap))

    cost = pl.CostEstimate(
        flops=8 * xf.size, transcendentals=0,
        bytes_accessed=xf.size * xf.dtype.itemsize + mask_bytes + out_bytes)

    h_out, w_out = pl.pallas_call(
        kernel,
        out_shape=out_shapes,
        grid_spec=pltpu.PrefetchScalarGridSpec(
            num_scalar_prefetch=0,
            grid=(num_chunks, steps),
            in_specs=in_specs,
            out_specs=out_specs,
            scratch_shapes=scratch,
        ),
        compiler_params=pltpu.CompilerParams(
            dimension_semantics=("parallel", "arbitrary"),
            vmem_limit_bytes=vmem_limit),
        cost_estimate=cost,
    )(*args)

    h_tv = jnp.sum(h_out)
    # Exclude the horizontal wrap column (and any W padding) here, for free.
    col = lax.broadcasted_iota(jnp.int32, (1, W_pad), 1)
    w_tv = jnp.sum(jnp.where(col < (W - 1), w_out, 0.0))
    return tv_loss_weight * 2.0 * (h_tv / image_size + w_tv / image_size) / B


def tv_loss_ref(x, *, tv_loss_weight=1.0, image_size=None, with_mask=False,
                patch_size=128, seam_wide=4):
    """Pure-JAX reference (mirrors the PyTorch forward)."""
    B, C, H, W = x.shape
    if image_size is None:
        image_size = H
    if with_mask:
        x = x * make_tv_mask(image_size, patch_size, seam_wide)[None, None]
    h_tv = jnp.sum((x[:, :, 1:, :] - x[:, :, : image_size - 1, :]) ** 2)
    w_tv = jnp.sum((x[:, :, :, 1:] - x[:, :, :, : image_size - 1]) ** 2)
    return tv_loss_weight * 2.0 * (h_tv / image_size + w_tv / image_size) / B


if __name__ == "__main__":
    key = jax.random.PRNGKey(0)
    B, C, S = 2, 4, 16  # batch, channels, imageSize (spatial)
    x = jax.random.normal(key, (B, C, S, S), dtype=jnp.float32)

    # 1) plain TV loss.
    out = jax.block_until_ready(tv_loss(x, tv_loss_weight=1.0, image_size=S))
    ref = tv_loss_ref(x, tv_loss_weight=1.0, image_size=S)
    assert jnp.allclose(out, ref, rtol=1e-5, atol=1e-5), (out, ref)

    # 2) masked TV loss with a non-trivial seam mask.
    out_m = jax.block_until_ready(
        tv_loss(x, tv_loss_weight=0.5, image_size=S, with_mask=True,
                patch_size=4, seam_wide=1))
    ref_m = tv_loss_ref(x, tv_loss_weight=0.5, image_size=S, with_mask=True,
                        patch_size=4, seam_wide=1)
    assert jnp.allclose(out_m, ref_m, rtol=1e-5, atol=1e-5), (out_m, ref_m)

    # 3) tiny budget -> multiple accumulation steps per chunk.
    out_s = jax.block_until_ready(
        tv_loss(x, tv_loss_weight=1.0, image_size=S, input_vmem_budget=1024))
    assert jnp.allclose(out_s, ref, rtol=1e-5, atol=1e-5), (out_s, ref)

    # 4) lane-aligned width -> exercises the lane-roll horizontal path.
    S2 = 128
    x2 = jax.random.normal(jax.random.PRNGKey(0), (1, 2, S2, S2), dtype=jnp.float32)
    out2 = jax.block_until_ready(tv_loss(x2, tv_loss_weight=1.0, image_size=S2))
    ref2 = tv_loss_ref(x2, tv_loss_weight=1.0, image_size=S2)
    assert jnp.allclose(out2, ref2, rtol=1e-5, atol=1e-5), (out2, ref2)

    print("KERNEL_OK")
</pallas_src>

<mosaic_0001>
module attributes {stable_mosaic.version = 11 : i64} {
  func.func @_tv_kernel(%arg0: i32, %arg1: i32, %arg2: memref<64x16xf32, #tpu.memory_space<vmem>>, %arg3: memref<8x16xf32, #tpu.memory_space<vmem>>, %arg4: memref<8x16xf32, #tpu.memory_space<vmem>>, %arg5: memref<64x16xf32, #tpu.memory_space<vmem>>) attributes {dimension_semantics = [#tpu.dimension_semantics<parallel>, #tpu.dimension_semantics<arbitrary>], iteration_bounds = array<i64: 2, 1>, scalar_prefetch = 0 : i64, scratch_operands = 1 : i64, tpu.core_type = #tpu.core_type<tc>, window_params = [{transform_indices = @transform_0, window_bounds = array<i64: 64, 16>}, {transform_indices = @transform_1, window_bounds = array<i64: 8, 16>}, {transform_indices = @transform_2, window_bounds = array<i64: 8, 16>}]} {
    %c0_i32 = arith.constant 0 : i32
    %0 = arith.cmpi eq, %arg1, %c0_i32 : i32
    %1 = arith.extui %0 : i1 to i32
    %c0_i32_0 = arith.constant 0 : i32
    %2 = arith.cmpi ne, %1, %c0_i32_0 : i32
    scf.if %2 {
      %cst_13 = arith.constant 0.000000e+00 : f32
      %23 = vector.broadcast %cst_13 : f32 to vector<8x16xf32>
      %c0_14 = arith.constant 0 : index
      %c0_15 = arith.constant 0 : index
      %24 = vector.load %arg3[%c0_14, %c0_15] : memref<8x16xf32, #tpu.memory_space<vmem>>, vector<8x16xf32>
      tpu.vector_store %arg3[%c0_14, %c0_15], %23 {strides = array<i32>} : memref<8x16xf32, #tpu.memory_space<vmem>>, vector<8x16xf32>,
      %cst_16 = arith.constant 0.000000e+00 : f32
      %25 = vector.broadcast %cst_16 : f32 to vector<8x16xf32>
      %c0_17 = arith.constant 0 : index
      %c0_18 = arith.constant 0 : index
      %26 = vector.load %arg4[%c0_17, %c0_18] : memref<8x16xf32, #tpu.memory_space<vmem>>, vector<8x16xf32>
      tpu.vector_store %arg4[%c0_17, %c0_18], %25 {strides = array<i32>} : memref<8x16xf32, #tpu.memory_space<vmem>>, vector<8x16xf32>,
      %27 = tpu.iota {dimensions = array<i32: 0>} : vector<64x16xi32>
      %c15_i32 = arith.constant 15 : i32
      %28 = vector.broadcast %c15_i32 : i32 to vector<64x16xi32>
      %29 = arith.andi %27, %28 : vector<64x16xi32>
      %c15_i32_19 = arith.constant 15 : i32
      %30 = vector.broadcast %c15_i32_19 : i32 to vector<64x16xi32>
      %31 = arith.cmpi ne, %29, %30 : vector<64x16xi32>
      %cst_20 = arith.constant 1.000000e+00 : f32
      %cst_21 = arith.constant 0.000000e+00 : f32
      %32 = vector.broadcast %cst_20 : f32 to vector<64x16xf32>
      %33 = vector.broadcast %cst_21 : f32 to vector<64x16xf32>
      %34 = arith.select %31, %32, %33 : vector<64x16xi1>, vector<64x16xf32>
      %c0_22 = arith.constant 0 : index
      %c0_23 = arith.constant 0 : index
      %35 = vector.load %arg5[%c0_22, %c0_23] : memref<64x16xf32, #tpu.memory_space<vmem>>, vector<64x16xf32>
      tpu.vector_store %arg5[%c0_22, %c0_23], %34 {strides = array<i32>} : memref<64x16xf32, #tpu.memory_space<vmem>>, vector<64x16xf32>,
    } else {
    }
    %c0 = arith.constant 0 : index
    %c0_1 = arith.constant 0 : index
    %3 = vector.load %arg2[%c0, %c0_1] : memref<64x16xf32, #tpu.memory_space<vmem>>, vector<64x16xf32>
    %c63_i32 = arith.constant 63 : i32
    %4 = tpu.dynamic_rotate %3 by %c63_i32 dim 0 : vector<64x16xf32>, i32 -> vector<64x16xf32>
    %5 = arith.subf %4, %3 : vector<64x16xf32>
    %c0_2 = arith.constant 0 : index
    %c0_3 = arith.constant 0 : index
    %6 = vector.load %arg5[%c0_2, %c0_3] : memref<64x16xf32, #tpu.memory_space<vmem>>, vector<64x16xf32>
    %7 = arith.mulf %5, %6 : vector<64x16xf32>
    %c0_4 = arith.constant 0 : index
    %c0_5 = arith.constant 0 : index
    %8 = vector.load %arg3[%c0_4, %c0_5] : memref<8x16xf32, #tpu.memory_space<vmem>>, vector<8x16xf32>
    %9 = arith.mulf %7, %7 : vector<64x16xf32>
    %10 = vector.shape_cast %9 : vector<64x16xf32> to vector<8x8x16xf32>
    %cst = arith.constant dense<0.000000e+00> : vector<8x16xf32>
    %11 = vector.multi_reduction <add>, %10, %cst [0] : vector<8x8x16xf32> to vector<8x16xf32>
    %12 = arith.addf %8, %11 : vector<8x16xf32>
    %c0_6 = arith.constant 0 : index
    %c0_7 = arith.constant 0 : index
    %13 = vector.load %arg3[%c0_6, %c0_7] : memref<8x16xf32, #tpu.memory_space<vmem>>, vector<8x16xf32>
    tpu.vector_store %arg3[%c0_6, %c0_7], %12 {strides = array<i32>} : memref<8x16xf32, #tpu.memory_space<vmem>>, vector<8x16xf32>,
    %14 = vector.extract_strided_slice %3 {offsets = [0, 1], sizes = [64, 15], strides = [1, 1]} : vector<64x16xf32> to vector<64x15xf32>
    %15 = vector.extract_strided_slice %3 {offsets = [0, 0], sizes = [64, 15], strides = [1, 1]} : vector<64x16xf32> to vector<64x15xf32>
    %16 = arith.subf %14, %15 : vector<64x15xf32>
    %c0_8 = arith.constant 0 : index
    %c0_9 = arith.constant 0 : index
    %17 = vector.load %arg4[%c0_8, %c0_9] : memref<8x16xf32, #tpu.memory_space<vmem>>, vector<8x15xf32>
    %18 = arith.mulf %16, %16 : vector<64x15xf32>
    %19 = vector.shape_cast %18 : vector<64x15xf32> to vector<8x8x15xf32>
    %cst_10 = arith.constant dense<0.000000e+00> : vector<8x15xf32>
    %20 = vector.multi_reduction <add>, %19, %cst_10 [0] : vector<8x8x15xf32> to vector<8x15xf32>
    %21 = arith.addf %17, %20 : vector<8x15xf32>
    %c0_11 = arith.constant 0 : index
    %c0_12 = arith.constant 0 : index
    %22 = vector.load %arg4[%c0_11, %c0_12] : memref<8x16xf32, #tpu.memory_space<vmem>>, vector<8x15xf32>
    tpu.vector_store %arg4[%c0_11, %c0_12], %21 {strides = array<i32>} : memref<8x16xf32, #tpu.memory_space<vmem>>, vector<8x15xf32>,
    return
  }
  func.func @transform_0(%arg0: i32, %arg1: i32) -> (i32, i32) {
    %c1_i32 = arith.constant 1 : i32
    %0 = arith.muli %arg0, %c1_i32 : i32
    %1 = arith.addi %0, %arg1 : i32
    %c0_i32 = arith.constant 0 : i32
    %c0_i32_0 = arith.constant 0 : i32
    return %1, %c0_i32 : i32, i32
  }
  func.func @transform_1(%arg0: i32, %arg1: i32) -> (i32, i32) {
    %c0_i32 = arith.constant 0 : i32
    %c0_i32_0 = arith.constant 0 : i32
    return %arg0, %c0_i32 : i32, i32
  }
  func.func @transform_2(%arg0: i32, %arg1: i32) -> (i32, i32) {
    %c0_i32 = arith.constant 0 : i32
    %c0_i32_0 = arith.constant 0 : i32
    return %arg0, %c0_i32 : i32, i32
  }
}

</mosaic_0001>

<llo_original>
// kernel: tpu_custom_call.1
$region0: #{tpu_custom_call.1}
  #allocation0 [shape = 'u32[]', space=smem, size = 0x4, offset = 0x4, fixed_abs, tag = 'smem constant byte address 0x4 - core index']
  #allocation1 [shape = 'u32[144,128]{1,0:T(1,128)}', space=vmem, size = 0x12000, scoped, tag = 'internal scratch']
  #allocation2 [shape = 'f32[64,16]{1,0:T(8,128)}', space=vmem, size = 0x8000, scoped, tag = 'scratch operand']
  %s0 = inlined_call_operand.vmem [shape: f32[128,16], index: 0, kind: input, shape index: {}]
  %s1 = inlined_call_operand.hbm [shape: f32[16,16], index: 1, kind: output, shape index: {0}]
  %s2 = inlined_call_operand.hbm [shape: f32[16,16], index: 2, kind: output, shape index: {1}]
  %3 = xla_tuple %s1, %s2
  %s4 = sld [smem:[#allocation0]]
  $region49: #{tpu_custom_call.1} parent=0
    _
  %s6 = ssub.s32 1, %s4
  %s7 = scalar_select 0, %s6, %s4
  $region1: #{tpu_custom_call.1} parent=0
    #allocation3 [shape = 'u8[8192]{0}', space=vmem, size = 0x2000, scoped, tag = 'output window, operand 0']
    #allocation4 [shape = 's32[2]{0}', space=sflag, size = 0x8, scoped, tag = 'scoped memory for tpu_custom_call.1']
    #allocation5 [shape = 'u8[8192]{0}', space=vmem, size = 0x2000, scoped, tag = 'output window, operand 1']
    #allocation6 [shape = 's32[2]{0}', space=sflag, size = 0x8, scoped, tag = 'scoped memory for tpu_custom_call.1']
    %8 = vsyncpa [#allocation4], 0
    %s9 = scalar_lea.sflag [#allocation4], 1
    %10 = vsyncpa %s9, 0
    %11 = vsyncpa [#allocation6], 0
    %s12 = scalar_lea.sflag [#allocation6], 1
    %13 = vsyncpa %s12, 0
    loop: start=0, step=1, limit=4
    $region2: #{tpu_custom_call.1} parent=1 // loop_pre_header
      _
    $region3: #{tpu_custom_call.1} parent=1 // loop_header
      %s15 = sphi 0, %s19
      %p16 = scmp.ge.s32.totalorder %s15, 4
      %s22 = sphi 0, %s34
      %s23 = sphi 0, %s30
      %s24 = sphi 0, %s22
      %s25 = sphi 0, %s23
      %s26 = sphi 0, %s24
      %s27 = sphi 0, %s25
      %s39 = sphi 0, %s41
      %s42 = sphi 0, %s39
      %s43 = sphi 0, %s42
      %s59 = sphi 0, %s43
      %s65 = sphi 0, %s67
      %s68 = sphi 0, %s65
      %s69 = sphi 0, %s68
      %s85 = sphi 0, %s69
      %s91 = sphi 0, %s93
      %s94 = sphi 0, %s91
      %s95 = sphi 0, %s94
      %s111 = sphi 0, %s95
    $region4: #{tpu_custom_call.1} parent=1 // loop_header_branch
      %18 = sbr.rel (%p16) target = $region8
    $region5: #{tpu_custom_call.1} parent=1 // loop_body
      %s20 = ssub.s32 %s15, 1
      %s21 = ssub.s32 %s15, 2
      %s28 = sadd.s32 1, %s23
      %p29 = scmp.ge.s32.totalorder %s28, 1
      %s30 = scalar_select %p29, 0, %s28
      %s31 = sadd.s32 1, %s22
      %s32 = scalar_select %p29, %s31, %s22
      %p33 = scmp.ge.s32.totalorder %s32, 2
      %s34 = scalar_select %p33, 0, %s32
      %s35 = sadd.s32 %s22, %s23
      %s36 = sadd.s32 %s34, %s30
      %s37 = ssub.s32 %s35, %s36
      %p38 = scmp.eq.s32.totalorder %s37, 0
      %s40 = sadd.s32 %s39, 1
      %s41 = scalar_select %p38, %s39, %s40
      %p44 = pneg %p38
      %p45 = scmp.eq.s32.totalorder %s15, 1
      %p46 = por %p44, %p45
      %p47 = scmp.ne.s32.totalorder %s39, %s42
      %p48 = scmp.eq.s32.totalorder %s15, 0
      %p49 = por %p47, %p48
      %p50 = scmp.ne.s32.totalorder %s39, %s42
      %p51 = scmp.eq.s32.totalorder %s20, 1
      %p52 = por %p50, %p51
      %p53 = scmp.ne.s32.totalorder %s42, %s43
      %p54 = scmp.eq.s32.totalorder %s20, 0
      %p55 = por %p53, %p54
      %p56 = scmp.ne.s32.totalorder %s42, %s43
      %p57 = scmp.eq.s32.totalorder %s21, 1
      %p58 = por %p56, %p57
      %p60 = scmp.ne.s32.totalorder %s43, %s59
      %p61 = scmp.eq.s32.totalorder %s21, 0
      %p62 = por %p60, %p61
      %s63 = ssub.s32 %s22, %s34
      %p64 = scmp.eq.s32.totalorder %s63, 0
      %s66 = sadd.s32 %s65, 1
      %s67 = scalar_select %p64, %s65, %s66
      %p70 = pneg %p64
      %p71 = scmp.eq.s32.totalorder %s15, 1
      %p72 = por %p70, %p71
      %p73 = scmp.ne.s32.totalorder %s65, %s68
      %p74 = scmp.eq.s32.totalorder %s15, 0
      %p75 = por %p73, %p74
      %p76 = scmp.ne.s32.totalorder %s65, %s68
      %p77 = scmp.eq.s32.totalorder %s20, 1
      %p78 = por %p76, %p77
      %p79 = scmp.ne.s32.totalorder %s68, %s69
      %p80 = scmp.eq.s32.totalorder %s20, 0
      %p81 = por %p79, %p80
      %p82 = scmp.ne.s32.totalorder %s68, %s69
      %p83 = scmp.eq.s32.totalorder %s21, 1
      %p84 = por %p82, %p83
      %p86 = scmp.ne.s32.totalorder %s69, %s85
      %p87 = scmp.eq.s32.totalorder %s21, 0
      %p88 = por %p86, %p87
      %s89 = ssub.s32 %s22, %s34
      %p90 = scmp.eq.s32.totalorder %s89, 0
      %s92 = sadd.s32 %s91, 1
      %s93 = scalar_select %p90, %s91, %s92
      %p96 = pneg %p90
      %p97 = scmp.eq.s32.totalorder %s15, 1
      %p98 = por %p96, %p97
      %p99 = scmp.ne.s32.totalorder %s91, %s94
      %p100 = scmp.eq.s32.totalorder %s15, 0
      %p101 = por %p99, %p100
      %p102 = scmp.ne.s32.totalorder %s91, %s94
      %p103 = scmp.eq.s32.totalorder %s20, 1
      %p104 = por %p102, %p103
      %p105 = scmp.ne.s32.totalorder %s94, %s95
      %p106 = scmp.eq.s32.totalorder %s20, 0
      %p107 = por %p105, %p106
      %p108 = scmp.ne.s32.totalorder %s94, %s95
      %p109 = scmp.eq.s32.totalorder %s21, 1
      %p110 = por %p108, %p109
      %p112 = scmp.ne.s32.totalorder %s95, %s111
      %p113 = scmp.eq.s32.totalorder %s21, 0
      %p114 = por %p112, %p113
      %p115 = scmp.le.s32.totalorder 1, %s15
      %p116 = scmp.lt.s32.totalorder %s15, 3
      %p117 = pnand %p115, %p116
      %p118 = pneg %p117
      // Predicated region
      $region9: #{tpu_custom_call.1} parent=5 // pred_check
        _
      $region10: #{tpu_custom_call.1} parent=5 // pred_check_branch
        %120 = sbr.rel (%p117) target = $region12
      $region11: #{tpu_custom_call.1} parent=5 // pred_region
        %s121 = ssub.s32 %s15, 1
      $region12: #{tpu_custom_call.1} parent=5 // pred_fallthru
        _
      %p122 = scmp.lt.s32.totalorder %s15, 2
      // Predicated region
      $region13: #{tpu_custom_call.1} parent=5 // pred_check
        %p123 = pneg %p122
      $region14: #{tpu_custom_call.1} parent=5 // pred_check_branch
        %125 = sbr.rel (%p123) target = $region16
      $region15: #{tpu_custom_call.1} parent=5 // pred_region
        // Predicated region
        $region17: #{tpu_custom_call.1} parent=15 // pred_check
          %p126 = pneg %p49
        $region18: #{tpu_custom_call.1} parent=15 // pred_check_branch
          %128 = sbr.rel (%p126) target = $region20
        $region19: #{tpu_custom_call.1} parent=15 // pred_region
          %s129 = sadd.s32 %s22, %s23
          %s130 = smul.u32 8, %s129
          %p131 = scmp.lt.s32.totalorder %s130, 15
          %s132 = scalar_select %p131, %s130, 15
          %s133 = smul.addr %s132, 8
          %s134 = scalar_lea.vmem %s0, %s133
          %s135 = sadd.s32 %s22, %s23
          %s136 = smul.u32 8, %s135
        $region20: #{tpu_custom_call.1} parent=15 // pred_fallthru
          _
      $region16: #{tpu_custom_call.1} parent=5 // pred_fallthru
        _
      %p137 = scmp.le.s32.totalorder 1, %s15
      %p138 = scmp.lt.s32.totalorder %s15, 3
      %p139 = pnand %p137, %p138
      %p140 = pneg %p139
      // Predicated region
      $region21: #{tpu_custom_call.1} parent=5 // pred_check
        _
      $region22: #{tpu_custom_call.1} parent=5 // pred_check_branch
        %142 = sbr.rel (%p139) target = $region24
      $region23: #{tpu_custom_call.1} parent=5 // pred_region
        %s143 = ssub.s32 %s15, 1
        %s144 = sadd.s32 %s24, %s25
        %s145 = smul.u32 8, %s144
        %p146 = scmp.lt.s32.totalorder %s145, 15
        %s147 = scalar_select %p146, %s145, 15
        %s148 = smul.addr %s147, 8
        %s149 = scalar_lea.vmem %s0, %s148
        %p150 = pneg %p55
        %p151 = pneg %p52
        %p152 = pneg %p81
        %p153 = pneg %p78
        %s154 = sand.u32 %s68, 1
        %s155 = scalar_lea.sflag [#allocation4], %s154
        %s156 = sand.u32 %s68, 1
        %s157 = smul.addr %s156, 8
        %s158 = scalar_lea.vmem [#allocation3], %s157
        %p159 = pneg %p107
        %p160 = pneg %p104
        %s161 = sand.u32 %s94, 1
        %s162 = scalar_lea.sflag [#allocation6], %s161
        %s163 = sand.u32 %s94, 1
        %s164 = smul.addr %s163, 8
        %s165 = scalar_lea.vmem [#allocation5], %s164
        %s166 = sadd.s32 %s24, %s25
        %s167 = smul.u32 8, %s166
        %p168 = scmp.lt.s32.totalorder %s167, 15
        %s169 = scalar_select %p168, %s167, 15
        %s170 = smul.addr %s169, 8
        %s171 = scalar_lea.vmem %s0, %s170
        %s172 = sadd.s32 %s24, %s25
        %s173 = smul.u32 8, %s172
        %p174 = scmp.eq.s32.totalorder %s25, 0
        // Predicated region
        $region25: #{tpu_custom_call.1} parent=23 // pred_check
          %p175 = pneg %p174
        $region26: #{tpu_custom_call.1} parent=23 // pred_check_branch
          %177 = sbr.rel (%p175) target = $region28
        $region27: #{tpu_custom_call.1} parent=23 // pred_region
          %vm178 = vcmask 130048
          %179 = vst.msk [vmem:[%s158] sm:$0xff] %vm178, 0.0
          %180 = vst.msk [vmem:[%s165] sm:$0xff] %vm178, 0.0
          %v181 = vlaneseq
          %v182 = vshrl.u32 %v181, 7
          %v183 = vadd.s32 %v182, 8
          %v184 = vadd.s32 %v182, 16
          %v185 = vadd.s32 %v182, 24
          %v186 = vadd.s32 %v182, 32
          %v187 = vadd.s32 %v182, 40
          %v188 = vadd.s32 %v182, 48
          %v189 = vadd.s32 %v182, 56
          %v190 = vand.u32 %v182, 15
          %v191 = vand.u32 %v183, 15
          %v192 = vand.u32 %v184, 15
          %v193 = vand.u32 %v185, 15
          %v194 = vand.u32 %v186, 15
          %v195 = vand.u32 %v187, 15
          %v196 = vand.u32 %v188, 15
          %v197 = vand.u32 %v189, 15
          %vm198 = vcmp.ne.s32.totalorder %v190, 15
          %vm199 = vcmp.ne.s32.totalorder %v191, 15
          %vm200 = vcmp.ne.s32.totalorder %v192, 15
          %vm201 = vcmp.ne.s32.totalorder %v193, 15
          %vm202 = vcmp.ne.s32.totalorder %v194, 15
          %vm203 = vcmp.ne.s32.totalorder %v195, 15
          %vm204 = vcmp.ne.s32.totalorder %v196, 15
          %vm205 = vcmp.ne.s32.totalorder %v197, 15
          %v206 = vsel %vm198, 1.0, 0.0
          %v207 = vsel %vm199, 1.0, 0.0
          %v208 = vsel %vm200, 1.0, 0.0
          %v209 = vsel %vm201, 1.0, 0.0
          %v210 = vsel %vm202, 1.0, 0.0
          %v211 = vsel %vm203, 1.0, 0.0
          %v212 = vsel %vm204, 1.0, 0.0
          %v213 = vsel %vm205, 1.0, 0.0
          %214 = vst.msk [vmem:[#allocation2] sm:$0xff] %vm178, %v206
          %215 = vst.msk [vmem:[#allocation2 + $0x8] sm:$0xff] %vm178, %v207
          %216 = vst.msk [vmem:[#allocation2 + $0x10] sm:$0xff] %vm178, %v208
          %217 = vst.msk [vmem:[#allocation2 + $0x18] sm:$0xff] %vm178, %v209
          %218 = vst.msk [vmem:[#allocation2 + $0x20] sm:$0xff] %vm178, %v210
          %219 = vst.msk [vmem:[#allocation2 + $0x28] sm:$0xff] %vm178, %v211
          %220 = vst.msk [vmem:[#allocation2 + $0x30] sm:$0xff] %vm178, %v212
          %221 = vst.msk [vmem:[#allocation2 + $0x38] sm:$0xff] %vm178, %v213
        $region28: #{tpu_custom_call.1} parent=23 // pred_fallthru
          _
        %v222 = vld [vmem:[%s171] sm:$0xff]
        %v223 = vld [vmem:[%s171 + $0x8] sm:$0xff]
        %v224 = vld [vmem:[%s171 + $0x10] sm:$0xff]
        %v225 = vld [vmem:[%s171 + $0x18] sm:$0xff]
        %v226 = vld [vmem:[%s171 + $0x20] sm:$0xff]
        %v227 = vld [vmem:[%s171 + $0x28] sm:$0xff]
        %v228 = vld [vmem:[%s171 + $0x30] sm:$0xff]
        %v229 = vld [vmem:[%s171 + $0x38] sm:$0xff]
        %v230 = vrot.slane %v222, 1
        %v231 = vrot.slane %v223, 1
        %v232 = vrot.slane %v224, 1
        %v233 = vrot.slane %v225, 1
        %v234 = vrot.slane %v226, 1
        %v235 = vrot.slane %v227, 1
        %v236 = vrot.slane %v228, 1
        %v237 = vrot.slane %v229, 1
        %v238 = vlaneseq
        %v239 = vshrl.u32 %v238, 7
        %vm240 = vcmp.lt.s32.totalorder %v239, 7
        %v241 = vsel %vm240, %v236, %v237
        %v242 = vsel %vm240, %v235, %v236
        %v243 = vsel %vm240, %v234, %v235
        %v244 = vsel %vm240, %v233, %v234
        %v245 = vsel %vm240, %v232, %v233
        %v246 = vsel %vm240, %v231, %v232
        %v247 = vsel %vm240, %v230, %v231
        %v248 = vsel %vm240, %v237, %v230
        %v249 = vsub.f32 %v247, %v222
        %v250 = vsub.f32 %v246, %v223
        %v251 = vsub.f32 %v245, %v224
        %v252 = vsub.f32 %v244, %v225
        %v253 = vsub.f32 %v243, %v226
        %v254 = vsub.f32 %v242, %v227
        %v255 = vsub.f32 %v241, %v228
        %v256 = vsub.f32 %v248, %v229
        %v257 = vld [vmem:[#allocation2] sm:$0xff]
        %v258 = vld [vmem:[#allocation2 + $0x8] sm:$0xff]
        %v259 = vld [vmem:[#allocation2 + $0x10] sm:$0xff]
        %v260 = vld [vmem:[#allocation2 + $0x18] sm:$0xff]
        %v261 = vld [vmem:[#allocation2 + $0x20] sm:$0xff]
        %v262 = vld [vmem:[#allocation2 + $0x28] sm:$0xff]
        %v263 = vld [vmem:[#allocation2 + $0x30] sm:$0xff]
        %v264 = vld [vmem:[#allocation2 + $0x38] sm:$0xff]
        %v265 = vmul.f32 %v249, %v257
        %v266 = vmul.f32 %v250, %v258
        %v267 = vmul.f32 %v251, %v259
        %v268 = vmul.f32 %v252, %v260
        %v269 = vmul.f32 %v253, %v261
        %v270 = vmul.f32 %v254, %v262
        %v271 = vmul.f32 %v255, %v263
        %v272 = vmul.f32 %v256, %v264
        %v273 = vld [vmem:[%s158] sm:$0xff]
        %v274 = vmul.f32 %v265, %v265
        %v275 = vmul.f32 %v266, %v266
        %v276 = vmul.f32 %v267, %v267
        %v277 = vmul.f32 %v268, %v268
        %v278 = vmul.f32 %v269, %v269
        %v279 = vmul.f32 %v270, %v270
        %v280 = vmul.f32 %v271, %v271
        %v281 = vmul.f32 %v272, %v272
        %vm282 = vcmask 130048
        %v283 = vsel %vm282, %v274, 0.0
        %v284 = vsel %vm282, %v275, 0.0
        %v285 = vadd.f32 %v283, %v284
        %v286 = vsel %vm282, %v276, 0.0
        %v287 = vadd.f32 %v285, %v286
        %v288 = vsel %vm282, %v277, 0.0
        %v289 = vadd.f32 %v287, %v288
        %v290 = vsel %vm282, %v278, 0.0
        %v291 = vadd.f32 %v289, %v290
        %v292 = vsel %vm282, %v279, 0.0
        %v293 = vadd.f32 %v291, %v292
        %v294 = vsel %vm282, %v280, 0.0
        %v295 = vadd.f32 %v293, %v294
        %v296 = vsel %vm282, %v281, 0.0
        %v297 = vadd.f32 %v295, %v296
        %v298 = vadd.f32 %v273, %v297
        %299 = vst.msk [vmem:[%s158] sm:$0xff] %vm282, %v298
        %308 = vrot.lane.b32.xlu0 %v222, 1
        %v309 = vpop.permute.xlu0 %308
        %310 = vrot.lane.b32.xlu0 %v223, 1
        %v311 = vpop.permute.xlu0 %310
        %312 = vrot.lane.b32.xlu0 %v224, 1
        %v313 = vpop.permute.xlu0 %312
        %314 = vrot.lane.b32.xlu0 %v225, 1
        %v315 = vpop.permute.xlu0 %314
        %316 = vrot.lane.b32.xlu0 %v226, 1
        %v317 = vpop.permute.xlu0 %316
        %318 = vrot.lane.b32.xlu0 %v227, 1
        %v319 = vpop.permute.xlu0 %318
        %320 = vrot.lane.b32.xlu0 %v228, 1
        %v321 = vpop.permute.xlu0 %320
        %322 = vrot.lane.b32.xlu0 %v229, 1
        %v323 = vpop.permute.xlu0 %322
        %v332 = vsub.f32 %v222, %v309
        %v333 = vsub.f32 %v223, %v311
        %v334 = vsub.f32 %v224, %v313
        %v335 = vsub.f32 %v225, %v315
        %v336 = vsub.f32 %v226, %v317
        %v337 = vsub.f32 %v227, %v319
        %v338 = vsub.f32 %v228, %v321
        %v339 = vsub.f32 %v229, %v323
        %v340 = vld [vmem:[%s165] sm:$0xff]
        %v341 = vmul.f32 %v332, %v332
        %v342 = vmul.f32 %v333, %v333
        %v343 = vmul.f32 %v334, %v334
        %v344 = vmul.f32 %v335, %v335
        %v345 = vmul.f32 %v336, %v336
        %v346 = vmul.f32 %v337, %v337
        %v347 = vmul.f32 %v338, %v338
        %v348 = vmul.f32 %v339, %v339
        %vm349 = vcmask 130056
        %v350 = vsel %vm349, %v341, 0.0
        %v351 = vsel %vm349, %v342, 0.0
        %v352 = vadd.f32 %v350, %v351
        %v353 = vsel %vm349, %v343, 0.0
        %v354 = vadd.f32 %v352, %v353
        %v355 = vsel %vm349, %v344, 0.0
        %v356 = vadd.f32 %v354, %v355
        %v357 = vsel %vm349, %v345, 0.0
        %v358 = vadd.f32 %v356, %v357
        %v359 = vsel %vm349, %v346, 0.0
        %v360 = vadd.f32 %v358, %v359
        %v361 = vsel %vm349, %v347, 0.0
        %v362 = vadd.f32 %v360, %v361
        %v363 = vsel %vm349, %v348, 0.0
        %v364 = vadd.f32 %v362, %v363
        %366 = vrot.lane.b32.xlu0 %v364, 127
        %v367 = vpop.permute.xlu0 %366
        %v369 = vadd.f32 %v340, %v367
        %vm370 = vcmask 121856
        %371 = vst.msk [vmem:[%s165] sm:$0xff] %vm370, %v369
        %s372 = sand.u32 %s68, 1
        %s373 = scalar_lea.sflag [#allocation4], %s372
        %s374 = sand.u32 %s68, 1
        %s375 = smul.addr %s374, 8
        %s376 = scalar_lea.vmem [#allocation3], %s375
        %s377 = sand.u32 %s94, 1
        %s378 = scalar_lea.sflag [#allocation6], %s377
        %s379 = sand.u32 %s94, 1
        %s380 = smul.addr %s379, 8
        %s381 = scalar_lea.vmem [#allocation5], %s380
        // Predicated region
        $region29: #{tpu_custom_call.1} parent=23 // pred_check
          %p382 = pneg %p78
        $region30: #{tpu_custom_call.1} parent=23 // pred_check_branch
          %384 = sbr.rel (%p382) target = $region32
        $region31: #{tpu_custom_call.1} parent=23 // pred_region
          %s386 = ssub.s32 128, 128
          %387 = vsyncadd %s373, %s386
          %s388 = smul.addr %s24, 128
          %s389 = scalar_lea.hbm %s1, %s388
          %s391 = sshll.u32 %s376, 4
          %s392 = int_to_ptr.vmem [resolvable:$true] %s391
          %394 = dma.vmem_to_hbm [thread:$0]  %s392, 128, %s389, %s373
        $region32: #{tpu_custom_call.1} parent=23 // pred_fallthru
          _
        // Predicated region
        $region33: #{tpu_custom_call.1} parent=23 // pred_check
          %p395 = pneg %p104
        $region34: #{tpu_custom_call.1} parent=23 // pred_check_branch
          %397 = sbr.rel (%p395) target = $region36
        $region35: #{tpu_custom_call.1} parent=23 // pred_region
          %s399 = ssub.s32 128, 128
          %400 = vsyncadd %s378, %s399
          %s401 = smul.addr %s24, 128
          %s402 = scalar_lea.hbm %s2, %s401
          %s404 = sshll.u32 %s381, 4
          %s405 = int_to_ptr.vmem [resolvable:$true] %s404
          %407 = dma.vmem_to_hbm [thread:$0]  %s405, 128, %s402, %s378
        $region36: #{tpu_custom_call.1} parent=23 // pred_fallthru
          _
      $region24: #{tpu_custom_call.1} parent=5 // pred_fallthru
        _
      %p408 = scmp.le.s32.totalorder 2, %s15
      // Predicated region
      $region37: #{tpu_custom_call.1} parent=5 // pred_check
        %p409 = pneg %p408
      $region38: #{tpu_custom_call.1} parent=5 // pred_check_branch
        %411 = sbr.rel (%p409) target = $region40
      $region39: #{tpu_custom_call.1} parent=5 // pred_region
        %s412 = ssub.s32 %s15, 2
        // Predicated region
        $region41: #{tpu_custom_call.1} parent=39 // pred_check
          %p413 = pneg %p84
        $region42: #{tpu_custom_call.1} parent=39 // pred_check_branch
          %415 = sbr.rel (%p413) target = $region44
        $region43: #{tpu_custom_call.1} parent=39 // pred_region
          %s416 = sand.u32 %s69, 1
          %s417 = scalar_lea.sflag [#allocation4], %s416
          %s418 = sand.u32 %s69, 1
          %s419 = smul.addr %s418, 8
          %s420 = scalar_lea.vmem [#allocation3], %s419
          %421 = dma.done %s417, 128
        $region44: #{tpu_custom_call.1} parent=39 // pred_fallthru
          _
        // Predicated region
        $region45: #{tpu_custom_call.1} parent=39 // pred_check
          %p422 = pneg %p110
        $region46: #{tpu_custom_call.1} parent=39 // pred_check_branch
          %424 = sbr.rel (%p422) target = $region48
        $region47: #{tpu_custom_call.1} parent=39 // pred_region
          %s425 = sand.u32 %s95, 1
          %s426 = scalar_lea.sflag [#allocation6], %s425
          %s427 = sand.u32 %s95, 1
          %s428 = smul.addr %s427, 8
          %s429 = scalar_lea.vmem [#allocation5], %s428
          %430 = dma.done %s426, 128
        $region48: #{tpu_custom_call.1} parent=39 // pred_fallthru
          _
      $region40: #{tpu_custom_call.1} parent=5 // pred_fallthru
        _
    $region6: #{tpu_custom_call.1} parent=1 // loop_footer
      %s19 = sadd.s32 1, %s15
    $region7: #{tpu_custom_call.1} parent=1 // loop_footer_branch
      %14 = sbr.rel target = $region3
    $region8: #{tpu_custom_call.1} parent=1 // loop_exit
      _
    %431 = vsyncpa [#allocation4], 1
    %s432 = scalar_lea.sflag [#allocation4], 1
    %433 = vsyncpa %s432, 1
    %434 = vsyncpa [#allocation6], 1
    %s435 = scalar_lea.sflag [#allocation6], 1
    %436 = vsyncpa %s435, 1

</llo_original>
